<compile_context>
chip_gen: v6e
topology: v6e:2x2x1
jax: 0.10.0
libtpu: 0.0.40
codegen_flags: <defaults>
</compile_context>

<pallas_src>
import functools

import jax
import jax.numpy as jnp
from jax import lax
from jax.experimental import pallas as pl
from jax.experimental.pallas import tpu as pltpu


def _round_up(x, m):
    return ((x + m - 1) // m) * m


def _gat_kernel(h_ref, wt_ref, b_ref, asrc_ref, adst_ref, ab_ref, adj_ref,
                out_ref, whf_ref, whb_ref, srow_ref, *, alpha, tm):
    i = pl.program_id(0)

    # ---- one-time work (grid step 0): projection + per-source score row ----
    @pl.when(i == 0)
    def _():
        wh = jnp.dot(h_ref[...], wt_ref[...],
                     preferred_element_type=jnp.float32) + b_ref[...]
        whf_ref[...] = wh                         # f32 copy for the score path
        whb_ref[...] = wh.astype(jnp.bfloat16)    # bf16 copy for attn @ Wh
        # s_row[j] = a_src . Wh[j]  (+ attention bias), for every source node j
        srow_ref[...] = lax.dot_general(
            asrc_ref[...], wh,
            dimension_numbers=(((1,), (1,)), ((), ())),
            preferred_element_type=jnp.float32) + ab_ref[...]

    # ---- per destination-row tile ----
    row0 = pl.multiple_of(i * tm, tm)
    wh_dst = whf_ref[pl.ds(row0, tm), :]                              # [TM, Fp]
    d_col = jnp.sum(wh_dst * adst_ref[...], axis=-1, keepdims=True)   # [TM, 1]

    e = d_col + srow_ref[...]                                         # [TM, Np]
    e = jnp.where(e > 0, e, alpha * e)                                # LeakyReLU

    # Masked softmax over incoming edges (src axis = lane axis). A single mask
    # pass suffices: exp(e - m) underflows to exactly 0 for masked entries
    # (every real dst row has >= 1 edge; fully-masked padded rows give a
    # harmless uniform attention that is sliced away by the wrapper).
    mask = adj_ref[...] > 0
    e = jnp.where(mask, e, -1e30)
    m = jnp.max(e, axis=-1, keepdims=True)
    p = jnp.exp(e - m)
    denom = jnp.sum(p, axis=-1, keepdims=True)
    attn = p * pl.reciprocal(denom, approx=True)                      # [TM, Np]

    # h' = attn @ Wh  (bf16 operands, f32 accumulation)
    out_ref[...] = jnp.dot(attn.astype(jnp.bfloat16), whb_ref[...],
                           preferred_element_type=jnp.float32)


def final_gat_layer(h, W, b, a_w, a_b, adj, *, alpha=0.2, tm=None):
    """h: [N, Fin], W: [Fout, Fin], b: [Fout], a_w: [1, 2*Fout], a_b: [1],
    adj: [N_dst, N_src] 0/1 mask. Returns h_prime: [N, Fout] (float32)."""
    N, Fin = h.shape
    Fout = W.shape[0]

    # Tile / padding choices: TM is a multiple of 128 (lane-dense, MXU-friendly,
    # modest enough for v7x's 64 MiB / v5e's scoped VMEM); all lane dims pad to 128.
    if tm is None:
        tm = min(256, _round_up(max(N, 1), 128))
    assert tm % 128 == 0, "tm must be a multiple of 128"
    TM = tm
    Np = _round_up(N, TM)
    Fin_p = _round_up(Fin, 128)
    Fout_p = _round_up(Fout, 128)

    f32, bf16 = jnp.float32, jnp.bfloat16

    # Zero-padded, lane-dense operands (bf16 for the big streams / MXU operands).
    h_p = jnp.zeros((Np, Fin_p), bf16).at[:N, :Fin].set(h.astype(bf16))
    Wt_p = jnp.zeros((Fin_p, Fout_p), bf16).at[:Fin, :Fout].set(W.T.astype(bf16))
    b_p = jnp.zeros((1, Fout_p), f32).at[0, :Fout].set(b.astype(f32))
    a_src_p = jnp.zeros((1, Fout_p), f32).at[0, :Fout].set(a_w[0, :Fout].astype(f32))
    a_dst_p = jnp.zeros((1, Fout_p), f32).at[0, :Fout].set(a_w[0, Fout:].astype(f32))
    ab = a_b.reshape(1, 1).astype(f32)
    adj_p = jnp.zeros((Np, Np), bf16).at[:N, :N].set(adj.astype(bf16))

    n_tiles = Np // TM
    kernel = functools.partial(_gat_kernel, alpha=float(alpha), tm=TM)

    cost = pl.CostEstimate(
        flops=int(2 * Np * Fin_p * Fout_p + 2 * Np * Np * Fout_p + 6 * Np * Np),
        transcendentals=int(Np * Np + Np),
        bytes_accessed=int(2 * Np * Np + 2 * Np * Fin_p + 2 * Fin_p * Fout_p
                           + 4 * Np * Fout_p),
    )

    out_p = pl.pallas_call(
        kernel,
        out_shape=jax.ShapeDtypeStruct((Np, Fout_p), f32),
        grid=(n_tiles,),
        in_specs=[
            pl.BlockSpec((Np, Fin_p), lambda i: (0, 0)),      # h        (resident)
            pl.BlockSpec((Fin_p, Fout_p), lambda i: (0, 0)),  # W^T      (resident)
            pl.BlockSpec((1, Fout_p), lambda i: (0, 0)),      # bias
            pl.BlockSpec((1, Fout_p), lambda i: (0, 0)),      # a_src
            pl.BlockSpec((1, Fout_p), lambda i: (0, 0)),      # a_dst
            pl.BlockSpec((1, 1), lambda i: (0, 0)),           # a bias
            pl.BlockSpec((TM, Np), lambda i: (i, 0)),         # adj (streamed)
        ],
        out_specs=pl.BlockSpec((TM, Fout_p), lambda i: (i, 0)),
        scratch_shapes=[
            pltpu.VMEM((Np, Fout_p), f32),    # Wh (f32, score path)
            pltpu.VMEM((Np, Fout_p), bf16),   # Wh (bf16, output matmul)
            pltpu.VMEM((1, Np), f32),         # s_row (+ a_bias)
        ],
        compiler_params=pltpu.CompilerParams(
            # The dst-tile axis carries the Wh/s_row scratch dependency from
            # step 0 -> must stay sequential ("arbitrary").
            dimension_semantics=("arbitrary",),
            vmem_limit_bytes=48 * 1024 * 1024,
        ),
        cost_estimate=cost,
    )(h_p, Wt_p, b_p, a_src_p, a_dst_p, ab, adj_p)

    return out_p[:N, :Fout]


def _reference(h, W, b, a_w, a_b, adj, alpha=0.2):
    """Plain-JAX f32 reference of the same forward (for correctness checks)."""
    Fout = W.shape[0]
    Wh = h @ W.T + b
    s = Wh @ a_w[0, :Fout]            # src contribution, per node
    d = Wh @ a_w[0, Fout:]            # dst contribution, per node
    e = d[:, None] + s[None, :] + a_b[0]
    e = jnp.where(e > 0, e, alpha * e)
    e = jnp.where(adj > 0, e, -1e30)
    e = e - jnp.max(e, axis=-1, keepdims=True)
    p = jnp.exp(e) * adj
    attn = p / jnp.sum(p, axis=-1, keepdims=True)
    return attn @ Wh


def _make_inputs(key, N, IN_F, OUT_F):
    k_h, k_w, k_b, k_aw, k_ab, k_adj = jax.random.split(key, 6)
    h = jax.random.normal(k_h, (N, IN_F), dtype=jnp.float32)
    gain = 1.414
    bw = gain * (6.0 / (IN_F + OUT_F)) ** 0.5
    W = jax.random.uniform(k_w, (OUT_F, IN_F), minval=-bw, maxval=bw,
                           dtype=jnp.float32)
    b = jax.random.uniform(k_b, (OUT_F,), minval=-1.0 / IN_F ** 0.5,
                           maxval=1.0 / IN_F ** 0.5, dtype=jnp.float32)
    ba = gain * (6.0 / (2 * OUT_F + 1)) ** 0.5
    a_w = jax.random.uniform(k_aw, (1, 2 * OUT_F), minval=-ba, maxval=ba,
                             dtype=jnp.float32)
    a_b = jax.random.uniform(k_ab, (1,), minval=-1.0 / (2 * OUT_F) ** 0.5,
                             maxval=1.0 / (2 * OUT_F) ** 0.5, dtype=jnp.float32)
    # Random directed graph; self-loops guarantee every node has an in-edge.
    adj = (jax.random.uniform(k_adj, (N, N)) < 0.3).astype(jnp.float32)
    adj = jnp.maximum(adj, jnp.eye(N, dtype=jnp.float32))
    return h, W, b, a_w, a_b, adj


if __name__ == "__main__":
    ALPHA = 0.2
    key = jax.random.PRNGKey(0)

    # Case 1: module-sized toy problem (single grid tile).
    h, W, b, a_w, a_b, adj = _make_inputs(key, N=16, IN_F=32, OUT_F=32)
    out = jax.block_until_ready(final_gat_layer(h, W, b, a_w, a_b, adj, alpha=ALPHA))
    # Compare against an f32 reference on the same bf16-quantized inputs.
    hq = h.astype(jnp.bfloat16).astype(jnp.float32)
    Wq = W.astype(jnp.bfloat16).astype(jnp.float32)
    ref = _reference(hq, Wq, b, a_w, a_b, adj, alpha=ALPHA)
    assert out.shape == (16, 32)
    assert jnp.allclose(out, ref, atol=5e-2, rtol=5e-2), "mismatch vs reference (N=16)"

    # Case 2: exercises the tiled path (2 dst tiles, padded N / Fout).
    key2 = jax.random.PRNGKey(1)
    h2, W2, b2, a_w2, a_b2, adj2 = _make_inputs(key2, N=200, IN_F=48, OUT_F=32)
    out2 = jax.block_until_ready(
        final_gat_layer(h2, W2, b2, a_w2, a_b2, adj2, alpha=ALPHA, tm=128))
    h2q = h2.astype(jnp.bfloat16).astype(jnp.float32)
    W2q = W2.astype(jnp.bfloat16).astype(jnp.float32)
    ref2 = _reference(h2q, W2q, b2, a_w2, a_b2, adj2, alpha=ALPHA)
    assert out2.shape == (200, 32)
    assert jnp.allclose(out2, ref2, atol=5e-2, rtol=5e-2), "mismatch vs reference (N=200)"

    print("KERNEL_OK")
</pallas_src>

<mosaic_0001>
module attributes {stable_mosaic.version = 11 : i64} {
  func.func @_gat_kernel(%arg0: i32, %arg1: memref<128x128xbf16, #tpu.memory_space<vmem>>, %arg2: memref<128x128xbf16, #tpu.memory_space<vmem>>, %arg3: memref<1x128xf32, #tpu.memory_space<vmem>>, %arg4: memref<1x128xf32, #tpu.memory_space<vmem>>, %arg5: memref<1x128xf32, #tpu.memory_space<vmem>>, %arg6: memref<1x1xf32, #tpu.memory_space<vmem>>, %arg7: memref<128x128xbf16, #tpu.memory_space<vmem>>, %arg8: memref<128x128xf32, #tpu.memory_space<vmem>>, %arg9: memref<128x128xf32, #tpu.memory_space<vmem>>, %arg10: memref<128x128xbf16, #tpu.memory_space<vmem>>, %arg11: memref<1x128xf32, #tpu.memory_space<vmem>>) attributes {dimension_semantics = [#tpu.dimension_semantics<arbitrary>], iteration_bounds = array<i64: 1>, scalar_prefetch = 0 : i64, scratch_operands = 3 : i64, tpu.core_type = #tpu.core_type<tc>, window_params = [{pipeline_mode = #tpu.pipeline_mode<synchronous>, transform_indices = @transform_0, window_bounds = array<i64: 128, 128>}, {pipeline_mode = #tpu.pipeline_mode<synchronous>, transform_indices = @transform_1, window_bounds = array<i64: 128, 128>}, {pipeline_mode = #tpu.pipeline_mode<synchronous>, transform_indices = @transform_2, window_bounds = array<i64: 1, 128>}, {pipeline_mode = #tpu.pipeline_mode<synchronous>, transform_indices = @transform_3, window_bounds = array<i64: 1, 128>}, {pipeline_mode = #tpu.pipeline_mode<synchronous>, transform_indices = @transform_4, window_bounds = array<i64: 1, 128>}, {pipeline_mode = #tpu.pipeline_mode<synchronous>, transform_indices = @transform_5, window_bounds = array<i64: 1, 1>}, {transform_indices = @transform_6, window_bounds = array<i64: 128, 128>}, {transform_indices = @transform_7, window_bounds = array<i64: 128, 128>}]} {
    %c0_i32 = arith.constant 0 : i32
    %0 = arith.cmpi eq, %arg0, %c0_i32 : i32
    %1 = arith.extui %0 : i1 to i32
    %c0_i32_0 = arith.constant 0 : i32
    %2 = arith.cmpi ne, %1, %c0_i32_0 : i32
    scf.if %2 {
      %c0_18 = arith.constant 0 : index
      %c0_19 = arith.constant 0 : index
      %40 = vector.load %arg1[%c0_18, %c0_19] : memref<128x128xbf16, #tpu.memory_space<vmem>>, vector<128x128xbf16>
      %c0_20 = arith.constant 0 : index
      %c0_21 = arith.constant 0 : index
      %41 = vector.load %arg2[%c0_20, %c0_21] : memref<128x128xbf16, #tpu.memory_space<vmem>>, vector<128x128xbf16>
      %cst_22 = arith.constant dense<0.000000e+00> : vector<128x128xf32>
      %42 = tpu.matmul %40, %41, %cst_22 {dimension_numbers = #tpu.dot_dimension_numbers<[1], [0], [0], [1], [0, 0, 1, 1], [], []>} : vector<128x128xbf16>, vector<128x128xbf16>, vector<128x128xf32> -> vector<128x128xf32>
      %c0_23 = arith.constant 0 : index
      %c0_24 = arith.constant 0 : index
      %43 = vector.load %arg3[%c0_23, %c0_24] : memref<1x128xf32, #tpu.memory_space<vmem>>, vector<1x128xf32>
      %44 = vector.broadcast %43 : vector<1x128xf32> to vector<128x128xf32>
      %45 = arith.addf %42, %44 : vector<128x128xf32>
      %c0_25 = arith.constant 0 : index
      %c0_26 = arith.constant 0 : index
      %46 = vector.load %arg9[%c0_25, %c0_26] : memref<128x128xf32, #tpu.memory_space<vmem>>, vector<128x128xf32>
      tpu.vector_store %arg9[%c0_25, %c0_26], %45 {strides = array<i32>} : memref<128x128xf32, #tpu.memory_space<vmem>>, vector<128x128xf32>,
      %47 = arith.truncf %45 : vector<128x128xf32> to vector<128x128xbf16>
      %c0_27 = arith.constant 0 : index
      %c0_28 = arith.constant 0 : index
      %48 = vector.load %arg10[%c0_27, %c0_28] : memref<128x128xbf16, #tpu.memory_space<vmem>>, vector<128x128xbf16>
      tpu.vector_store %arg10[%c0_27, %c0_28], %47 {strides = array<i32>} : memref<128x128xbf16, #tpu.memory_space<vmem>>, vector<128x128xbf16>,
      %c0_29 = arith.constant 0 : index
      %c0_30 = arith.constant 0 : index
      %49 = vector.load %arg4[%c0_29, %c0_30] : memref<1x128xf32, #tpu.memory_space<vmem>>, vector<1x128xf32>
      %cst_31 = arith.constant dense<0.000000e+00> : vector<1x128xf32>
      %50 = tpu.matmul %49, %45, %cst_31 {dimension_numbers = #tpu.dot_dimension_numbers<[1], [1], [0], [0], [0, 0, 1, 0], [], []>} : vector<1x128xf32>, vector<128x128xf32>, vector<1x128xf32> -> vector<1x128xf32>
      %c0_32 = arith.constant 0 : index
      %c0_33 = arith.constant 0 : index
      %51 = vector.load %arg6[%c0_32, %c0_33] : memref<1x1xf32, #tpu.memory_space<vmem>>, vector<1x1xf32>
      %52 = vector.broadcast %51 : vector<1x1xf32> to vector<1x128xf32>
      %53 = arith.addf %50, %52 : vector<1x128xf32>
      %c0_34 = arith.constant 0 : index
      %c0_35 = arith.constant 0 : index
      %54 = vector.load %arg11[%c0_34, %c0_35] : memref<1x128xf32, #tpu.memory_space<vmem>>, vector<1x128xf32>
      tpu.vector_store %arg11[%c0_34, %c0_35], %53 {strides = array<i32>} : memref<1x128xf32, #tpu.memory_space<vmem>>, vector<1x128xf32>,
    } else {
    }
    %c128_i32 = arith.constant 128 : i32
    %3 = arith.muli %arg0, %c128_i32 : i32
    %4 = tpu.assume_multiple %3, 128 : i32
    %5 = arith.index_cast %4 : i32 to index
    %c0 = arith.constant 0 : index
    %6 = vector.load %arg9[%5, %c0] : memref<128x128xf32, #tpu.memory_space<vmem>>, vector<128x128xf32>
    %c0_1 = arith.constant 0 : index
    %c0_2 = arith.constant 0 : index
    %7 = vector.load %arg5[%c0_1, %c0_2] : memref<1x128xf32, #tpu.memory_space<vmem>>, vector<1x128xf32>
    %8 = vector.broadcast %7 : vector<1x128xf32> to vector<128x128xf32>
    %9 = arith.mulf %6, %8 : vector<128x128xf32>
    %cst = arith.constant dense<0.000000e+00> : vector<128xf32>
    %10 = vector.multi_reduction <add>, %9, %cst [1] : vector<128x128xf32> to vector<128xf32>
    %11 = vector.shape_cast %10 : vector<128xf32> to vector<128x1xf32>
    %c0_3 = arith.constant 0 : index
    %c0_4 = arith.constant 0 : index
    %12 = vector.load %arg11[%c0_3, %c0_4] : memref<1x128xf32, #tpu.memory_space<vmem>>, vector<1x128xf32>
    %13 = vector.broadcast %11 : vector<128x1xf32> to vector<128x128xf32>
    %14 = vector.broadcast %12 : vector<1x128xf32> to vector<128x128xf32>
    %15 = arith.addf %13, %14 : vector<128x128xf32>
    %cst_5 = arith.constant 0.000000e+00 : f32
    %16 = vector.broadcast %cst_5 : f32 to vector<128x128xf32>
    %17 = arith.cmpf ogt, %15, %16 : vector<128x128xf32>
    %cst_6 = arith.constant 2.000000e-01 : f32
    %18 = vector.broadcast %cst_6 : f32 to vector<128x128xf32>
    %19 = arith.mulf %18, %15 : vector<128x128xf32>
    %20 = arith.select %17, %15, %19 : vector<128x128xi1>, vector<128x128xf32>
    %c0_7 = arith.constant 0 : index
    %c0_8 = arith.constant 0 : index
    %21 = vector.load %arg7[%c0_7, %c0_8] : memref<128x128xbf16, #tpu.memory_space<vmem>>, vector<128x128xbf16>
    %cst_9 = arith.constant 0.000000e+00 : bf16
    %22 = vector.broadcast %cst_9 : bf16 to vector<128x128xbf16>
    %23 = arith.cmpf ogt, %21, %22 : vector<128x128xbf16>
    %cst_10 = arith.constant -1.000000e+30 : f32
    %24 = vector.broadcast %cst_10 : f32 to vector<128x128xf32>
    %25 = arith.select %23, %20, %24 : vector<128x128xi1>, vector<128x128xf32>
    %cst_11 = arith.constant dense<0xFF800000> : vector<128xf32>
    %26 = vector.multi_reduction <maximumf>, %25, %cst_11 [1] : vector<128x128xf32> to vector<128xf32>
    %27 = vector.shape_cast %26 : vector<128xf32> to vector<128x1xf32>
    %28 = vector.broadcast %27 : vector<128x1xf32> to vector<128x128xf32>
    %29 = arith.subf %25, %28 : vector<128x128xf32>
    %30 = math.exp %29 : vector<128x128xf32>
    %cst_12 = arith.constant dense<0.000000e+00> : vector<128xf32>
    %31 = vector.multi_reduction <add>, %30, %cst_12 [1] : vector<128x128xf32> to vector<128xf32>
    %32 = vector.shape_cast %31 : vector<128xf32> to vector<128x1xf32>
    %33 = tpu.reciprocal %32 {approx = true} : vector<128x1xf32> -> vector<128x1xf32>
    %34 = vector.broadcast %33 : vector<128x1xf32> to vector<128x128xf32>
    %35 = arith.mulf %30, %34 : vector<128x128xf32>
    %36 = arith.truncf %35 : vector<128x128xf32> to vector<128x128xbf16>
    %c0_13 = arith.constant 0 : index
    %c0_14 = arith.constant 0 : index
    %37 = vector.load %arg10[%c0_13, %c0_14] : memref<128x128xbf16, #tpu.memory_space<vmem>>, vector<128x128xbf16>
    %cst_15 = arith.constant dense<0.000000e+00> : vector<128x128xf32>
    %38 = tpu.matmul %36, %37, %cst_15 {dimension_numbers = #tpu.dot_dimension_numbers<[1], [0], [0], [1], [0, 0, 1, 1], [], []>} : vector<128x128xbf16>, vector<128x128xbf16>, vector<128x128xf32> -> vector<128x128xf32>
    %c0_16 = arith.constant 0 : index
    %c0_17 = arith.constant 0 : index
    %39 = vector.load %arg8[%c0_16, %c0_17] : memref<128x128xf32, #tpu.memory_space<vmem>>, vector<128x128xf32>
    tpu.vector_store %arg8[%c0_16, %c0_17], %38 {strides = array<i32>} : memref<128x128xf32, #tpu.memory_space<vmem>>, vector<128x128xf32>,
    return
  }
  func.func @transform_0(%arg0: i32) -> (i32, i32) {
    %c0_i32 = arith.constant 0 : i32
    %c0_i32_0 = arith.constant 0 : i32
    %c0_i32_1 = arith.constant 0 : i32
    return %c0_i32, %c0_i32_0 : i32, i32
  }
  func.func @transform_1(%arg0: i32) -> (i32, i32) {
    %c0_i32 = arith.constant 0 : i32
    %c0_i32_0 = arith.constant 0 : i32
    %c0_i32_1 = arith.constant 0 : i32
    return %c0_i32, %c0_i32_0 : i32, i32
  }
  func.func @transform_2(%arg0: i32) -> (i32, i32) {
    %c0_i32 = arith.constant 0 : i32
    %c0_i32_0 = arith.constant 0 : i32
    %c0_i32_1 = arith.constant 0 : i32
    return %c0_i32, %c0_i32_0 : i32, i32
  }
  func.func @transform_3(%arg0: i32) -> (i32, i32) {
    %c0_i32 = arith.constant 0 : i32
    %c0_i32_0 = arith.constant 0 : i32
    %c0_i32_1 = arith.constant 0 : i32
    return %c0_i32, %c0_i32_0 : i32, i32
  }
  func.func @transform_4(%arg0: i32) -> (i32, i32) {
    %c0_i32 = arith.constant 0 : i32
    %c0_i32_0 = arith.constant 0 : i32
    %c0_i32_1 = arith.constant 0 : i32
    return %c0_i32, %c0_i32_0 : i32, i32
  }
  func.func @transform_5(%arg0: i32) -> (i32, i32) {
    %c0_i32 = arith.constant 0 : i32
    %c0_i32_0 = arith.constant 0 : i32
    %c0_i32_1 = arith.constant 0 : i32
    return %c0_i32, %c0_i32_0 : i32, i32
  }
  func.func @transform_6(%arg0: i32) -> (i32, i32) {
    %c0_i32 = arith.constant 0 : i32
    %c0_i32_0 = arith.constant 0 : i32
    return %arg0, %c0_i32 : i32, i32
  }
  func.func @transform_7(%arg0: i32) -> (i32, i32) {
    %c0_i32 = arith.constant 0 : i32
    %c0_i32_0 = arith.constant 0 : i32
    return %arg0, %c0_i32 : i32, i32
  }
}

</mosaic_0001>

<llo_original>
// kernel: tpu_custom_call.1
$region0: #{tpu_custom_call.1}
  #allocation0 [shape = 'u32[]', space=smem, size = 0x4, offset = 0x4, fixed_abs, tag = 'smem constant byte address 0x4 - core index']
  #allocation1 [shape = 'u32[144,128]{1,0:T(1,128)}', space=vmem, size = 0x12000, scoped, tag = 'internal scratch']
  #allocation2 [shape = 'f32[128,128]{1,0:T(8,128)}', space=vmem, size = 0x10000, scoped, tag = 'scratch operand']
  #allocation3 [shape = 'bf16[128,128]{1,0:T(8,128)(2,1)}', space=vmem, size = 0x8000, scoped, tag = 'scratch operand']
  #allocation4 [shape = 'f32[1,128]{1,0:T(1,128)}', space=vmem, size = 0x200, scoped, tag = 'scratch operand']
  #allocation5 [shape = 'f32[1,1]{1,0:T(1,128)S(1)}', space=vmem, size = 0x200, scoped, tag = 'scoped memory for tpu_custom_call.1']
  %s0 = inlined_call_operand.hbm [shape: bf16[128,128], index: 0, kind: input, shape index: {}]
  %s1 = inlined_call_operand.hbm [shape: bf16[128,128], index: 1, kind: input, shape index: {}]
  %s2 = inlined_call_operand.vmem [shape: f32[1,128], index: 2, kind: input, shape index: {}]
  %s3 = inlined_call_operand.vmem [shape: f32[1,128], index: 3, kind: input, shape index: {}]
  %s4 = inlined_call_operand.vmem [shape: f32[1,128], index: 4, kind: input, shape index: {}]
  %s5 = inlined_call_operand.<no memory space> [shape: f32[1,1], index: 5, kind: input, shape index: {}]
  %s6 = inlined_call_operand.hbm [shape: bf16[128,128], index: 6, kind: input, shape index: {}]
  %s7 = inlined_call_operand.hbm [shape: f32[128,128], index: 7, kind: output, shape index: {}]
  %s8 = sld [smem:[#allocation0]]
  $region54: #{tpu_custom_call.1} parent=0
    _
  %s10 = ssub.s32 1, %s8
  %s11 = scalar_select 0, %s10, %s8
  %v12 = vstv %s5
  %13 = vst [vmem:[#allocation5] sm:$0x1] %v12
  $region1: #{tpu_custom_call.1} parent=0
    #allocation6 [shape = 'u8[32768]{0}', space=vmem, size = 0x8000, scoped, tag = 'input window, operand 0, single buffered']
    #allocation7 [shape = 's32[1]{0}', space=sflag, size = 0x4, scoped, tag = 'scoped memory for tpu_custom_call.1']
    #allocation8 [shape = 's32[1]{0}', space=sflag, size = 0x4, scoped, tag = 'scoped memory for tpu_custom_call.1']
    #allocation9 [shape = 'u8[32768]{0}', space=vmem, size = 0x8000, scoped, tag = 'input window, operand 1, single buffered']
    #allocation10 [shape = 's32[1]{0}', space=sflag, size = 0x4, scoped, tag = 'scoped memory for tpu_custom_call.1']
    #allocation11 [shape = 'u8[32768]{0}', space=vmem, size = 0x8000, scoped, tag = 'input window, operand 6, single buffered']
    #allocation12 [shape = 'u8[65536]{0}', space=vmem, size = 0x10000, scoped, tag = 'output window, operand 0, single buffered']
    %14 = vsyncpa [#allocation7], 0
    %15 = vsyncpa [#allocation10], 0
    %16 = vsyncpa [#allocation8], 0
    // Predicated region
    $region2: #{tpu_custom_call.1} parent=1 // pred_check
      _
    $region3: #{tpu_custom_call.1} parent=1 // pred_check_branch
      %18 = sbr.rel (0) target = $region5
    $region4: #{tpu_custom_call.1} parent=1 // pred_region
      %s20 = ssub.s32 1024, 1024
      %21 = vsyncadd [#allocation7], %s20
      %s22 = sshll.u32 [#allocation6], 4
      %s23 = int_to_ptr.vmem [resolvable:$true] %s22
      %28 = dma.hbm_to_vmem [thread:$0]  %s0, 1024, %s23, [#allocation7], 64, 64, 4
    $region5: #{tpu_custom_call.1} parent=1 // pred_fallthru
      _
    // Predicated region
    $region6: #{tpu_custom_call.1} parent=1 // pred_check
      _
    $region7: #{tpu_custom_call.1} parent=1 // pred_check_branch
      %30 = sbr.rel (0) target = $region9
    $region8: #{tpu_custom_call.1} parent=1 // pred_region
      %s32 = ssub.s32 1024, 1024
      %33 = vsyncadd [#allocation10], %s32
      %s34 = sshll.u32 [#allocation9], 4
      %s35 = int_to_ptr.vmem [resolvable:$true] %s34
      %40 = dma.hbm_to_vmem [thread:$0]  %s1, 1024, %s35, [#allocation10], 64, 64, 4
    $region9: #{tpu_custom_call.1} parent=1 // pred_fallthru
      _
    // Predicated region
    $region10: #{tpu_custom_call.1} parent=1 // pred_check
      _
    $region11: #{tpu_custom_call.1} parent=1 // pred_check_branch
      %42 = sbr.rel (0) target = $region13
    $region12: #{tpu_custom_call.1} parent=1 // pred_region
      _
    $region13: #{tpu_custom_call.1} parent=1 // pred_fallthru
      _
    // Predicated region
    $region14: #{tpu_custom_call.1} parent=1 // pred_check
      _
    $region15: #{tpu_custom_call.1} parent=1 // pred_check_branch
      %44 = sbr.rel (0) target = $region17
    $region16: #{tpu_custom_call.1} parent=1 // pred_region
      _
    $region17: #{tpu_custom_call.1} parent=1 // pred_fallthru
      _
    // Predicated region
    $region18: #{tpu_custom_call.1} parent=1 // pred_check
      _
    $region19: #{tpu_custom_call.1} parent=1 // pred_check_branch
      %46 = sbr.rel (0) target = $region21
    $region20: #{tpu_custom_call.1} parent=1 // pred_region
      _
    $region21: #{tpu_custom_call.1} parent=1 // pred_fallthru
      _
    // Predicated region
    $region22: #{tpu_custom_call.1} parent=1 // pred_check
      _
    $region23: #{tpu_custom_call.1} parent=1 // pred_check_branch
      %48 = sbr.rel (0) target = $region25
    $region24: #{tpu_custom_call.1} parent=1 // pred_region
      _
    $region25: #{tpu_custom_call.1} parent=1 // pred_fallthru
      _
    // Predicated region
    $region26: #{tpu_custom_call.1} parent=1 // pred_check
      _
    $region27: #{tpu_custom_call.1} parent=1 // pred_check_branch
      %50 = sbr.rel (0) target = $region29
    $region28: #{tpu_custom_call.1} parent=1 // pred_region
      %s52 = ssub.s32 1024, 1024
      %53 = vsyncadd [#allocation10], %s52
      %s54 = sshll.u32 [#allocation11], 4
      %s55 = int_to_ptr.vmem [resolvable:$true] %s54
      %60 = dma.hbm_to_vmem [thread:$0]  %s6, 1024, %s55, [#allocation10], 64, 64, 4
    $region29: #{tpu_custom_call.1} parent=1 // pred_fallthru
      _
    // Predicated region
    $region30: #{tpu_custom_call.1} parent=1 // pred_check
      _
    $region31: #{tpu_custom_call.1} parent=1 // pred_check_branch
      %62 = sbr.rel (0) target = $region33
    $region32: #{tpu_custom_call.1} parent=1 // pred_region
      %63 = dma.done [#allocation7], 1024
    $region33: #{tpu_custom_call.1} parent=1 // pred_fallthru
      _
    // Predicated region
    $region34: #{tpu_custom_call.1} parent=1 // pred_check
      _
    $region35: #{tpu_custom_call.1} parent=1 // pred_check_branch
      %65 = sbr.rel (0) target = $region37
    $region36: #{tpu_custom_call.1} parent=1 // pred_region
      %66 = dma.done [#allocation10], 1024
    $region37: #{tpu_custom_call.1} parent=1 // pred_fallthru
      _
    // Predicated region
    $region38: #{tpu_custom_call.1} parent=1 // pred_check
      _
    $region39: #{tpu_custom_call.1} parent=1 // pred_check_branch
      %68 = sbr.rel (0) target = $region41
    $region40: #{tpu_custom_call.1} parent=1 // pred_region
      %69 = dma.done [#allocation10], 1024
    $region41: #{tpu_custom_call.1} parent=1 // pred_fallthru
      _
    %p73 = scmp.eq.s32.totalorder 0, 0
    // Predicated region
    $region42: #{tpu_custom_call.1} parent=1 // pred_check
      %p74 = pneg %p73
    $region43: #{tpu_custom_call.1} parent=1 // pred_check_branch
      %76 = sbr.rel (%p74) target = $region45
    $region44: #{tpu_custom_call.1} parent=1 // pred_region
      %v77 = vld [vmem:[#allocation6] sm:$0xf]
      %v78 = vld [vmem:[#allocation6 + $0x4] sm:$0xf]
      %v79 = vld [vmem:[#allocation6 + $0x8] sm:$0xf]
      %v80 = vld [vmem:[#allocation6 + $0xc] sm:$0xf]
      %v81 = vld [vmem:[#allocation6 + $0x10] sm:$0xf]
      %v82 = vld [vmem:[#allocation6 + $0x14] sm:$0xf]
      %v83 = vld [vmem:[#allocation6 + $0x18] sm:$0xf]
      %v84 = vld [vmem:[#allocation6 + $0x1c] sm:$0xf]
      %v85 = vld [vmem:[#allocation6 + $0x20] sm:$0xf]
      %v86 = vld [vmem:[#allocation6 + $0x24] sm:$0xf]
      %v87 = vld [vmem:[#allocation6 + $0x28] sm:$0xf]
      %v88 = vld [vmem:[#allocation6 + $0x2c] sm:$0xf]
      %v89 = vld [vmem:[#allocation6 + $0x30] sm:$0xf]
      %v90 = vld [vmem:[#allocation6 + $0x34] sm:$0xf]
      %v91 = vld [vmem:[#allocation6 + $0x38] sm:$0xf]
      %v92 = vld [vmem:[#allocation6 + $0x3c] sm:$0xf]
      %v93 = vld [vmem:[#allocation9] sm:$0xf]
      %v94 = vld [vmem:[#allocation9 + $0x4] sm:$0xf]
      %v95 = vld [vmem:[#allocation9 + $0x8] sm:$0xf]
      %v96 = vld [vmem:[#allocation9 + $0xc] sm:$0xf]
      %v97 = vld [vmem:[#allocation9 + $0x10] sm:$0xf]
      %v98 = vld [vmem:[#allocation9 + $0x14] sm:$0xf]
      %v99 = vld [vmem:[#allocation9 + $0x18] sm:$0xf]
      %v100 = vld [vmem:[#allocation9 + $0x1c] sm:$0xf]
      %v101 = vld [vmem:[#allocation9 + $0x20] sm:$0xf]
      %v102 = vld [vmem:[#allocation9 + $0x24] sm:$0xf]
      %v103 = vld [vmem:[#allocation9 + $0x28] sm:$0xf]
      %v104 = vld [vmem:[#allocation9 + $0x2c] sm:$0xf]
      %v105 = vld [vmem:[#allocation9 + $0x30] sm:$0xf]
      %v106 = vld [vmem:[#allocation9 + $0x34] sm:$0xf]
      %v107 = vld [vmem:[#allocation9 + $0x38] sm:$0xf]
      %v108 = vld [vmem:[#allocation9 + $0x3c] sm:$0xf]
      %v109 = vld [vmem:[%s2] sm:$0x1]
      %v111 = vlaneseq
      %v112 = vshrl.u32 %v111, 7
      %v113 = vsub.s32 0, %v112
      %v114 = vrot.slane %v109, %v113
      %v132 = vunpack.c.l.b16 %v77
      %v133 = vunpack.c.l.b16 %v78
      %v134 = vunpack.c.l.b16 %v79
      %v135 = vunpack.c.l.b16 %v80
      %v136 = vunpack.c.l.b16 %v81
      %v137 = vunpack.c.l.b16 %v82
      %v138 = vunpack.c.l.b16 %v83
      %v139 = vunpack.c.l.b16 %v84
      %v140 = vunpack.c.l.b16 %v85
      %v141 = vunpack.c.l.b16 %v86
      %v142 = vunpack.c.l.b16 %v87
      %v143 = vunpack.c.l.b16 %v88
      %v144 = vunpack.c.l.b16 %v89
      %v145 = vunpack.c.l.b16 %v90
      %v146 = vunpack.c.l.b16 %v91
      %v147 = vunpack.c.l.b16 %v92
      %v148 = vpack.c.b16 %v133, %v132
      %v149 = vpack.c.b16 %v135, %v134
      %v150 = vpack.c.b16 %v137, %v136
      %v151 = vpack.c.b16 %v139, %v138
      %v152 = vpack.c.b16 %v141, %v140
      %v153 = vpack.c.b16 %v143, %v142
      %v154 = vpack.c.b16 %v145, %v144
      %v155 = vpack.c.b16 %v147, %v146
      %v180 = vunpack.c.l.b16 %v93
      %v181 = vunpack.c.l.b16 %v94
      %v182 = vunpack.c.l.b16 %v95
      %v183 = vunpack.c.l.b16 %v96
      %v184 = vunpack.c.l.b16 %v97
      %v185 = vunpack.c.l.b16 %v98
      %v186 = vunpack.c.l.b16 %v99
      %v187 = vunpack.c.l.b16 %v100
      %v188 = vunpack.c.l.b16 %v101
      %v189 = vunpack.c.l.b16 %v102
      %v190 = vunpack.c.l.b16 %v103
      %v191 = vunpack.c.l.b16 %v104
      %v192 = vunpack.c.l.b16 %v105
      %v193 = vunpack.c.l.b16 %v106
      %v194 = vunpack.c.l.b16 %v107
      %v195 = vunpack.c.l.b16 %v108
      %v196 = vpack.c.b16 %v181, %v180
      %v197 = vpack.c.b16 %v183, %v182
      %v198 = vpack.c.b16 %v185, %v184
      %v199 = vpack.c.b16 %v187, %v186
      %v200 = vpack.c.b16 %v189, %v188
      %v201 = vpack.c.b16 %v191, %v190
      %v202 = vpack.c.b16 %v193, %v192
      %v203 = vpack.c.b16 %v195, %v194
      %212 = vmatprep.subr.bf16.mxu0 0
      %213 = vmatpush1.bf16.msra.mxu0 %v203
      %214 = vmatprep.subr.bf16.mxu0 0
      %215 = vmatpush1.bf16.msra.mxu0 %v202
      %216 = vmatprep.subr.bf16.mxu0 0
      %217 = vmatpush1.bf16.msra.mxu0 %v201
      %218 = vmatprep.subr.bf16.mxu0 0
      %219 = vmatpush1.bf16.msra.mxu0 %v200
      %220 = vmatprep.subr.bf16.mxu0 0
      %221 = vmatpush1.bf16.msra.mxu0 %v199
      %222 = vmatprep.subr.bf16.mxu0 0
      %223 = vmatpush1.bf16.msra.mxu0 %v198
      %224 = vmatprep.subr.bf16.mxu0 0
      %225 = vmatpush1.bf16.msra.mxu0 %v197
      %226 = vmatprep.subr.bf16.mxu0 0
      %227 = vmatpush1.bf16.msra.mxu0 %v196
      %228 = vmatprep.subr.bf16.mxu0 0
      %229 = vmatpush2.bf16.msra.mxu0 0
      %230 = vmatprep.subr.bf16.mxu0 0
      %231 = vmatpush2.bf16.msra.mxu0 0
      %232 = vmatprep.subr.bf16.mxu0 0
      %233 = vmatpush2.bf16.msra.mxu0 0
      %234 = vmatprep.subr.bf16.mxu0 0
      %235 = vmatpush2.bf16.msra.mxu0 0
      %236 = vmatprep.subr.bf16.mxu0 0
      %237 = vmatpush2.bf16.msra.mxu0 0
      %238 = vmatprep.subr.bf16.mxu0 0
      %239 = vmatpush2.bf16.msra.mxu0 0
      %240 = vmatprep.subr.bf16.mxu0 0
      %241 = vmatpush2.bf16.msra.mxu0 0
      %242 = vmatprep.subr.bf16.mxu0 0
      %243 = vmatpush2.bf16.msra.mxu0 0
      %244 = vmatprep.mubr.bf16.mxu0 0
      %245 = vmatmul.mubr.bf16.gmra.mxu0 %v148
      %v246 = vpop.f32.mrf.mxu0
      %v247 = vadd.f32 %v114, %v246
      %v248 = vpop.f32.mrf.mxu0
      %v249 = vpop.f32.mrf.mxu0
      %v250 = vadd.f32 %v114, %v249
      %v251 = vpop.f32.mrf.mxu0
      %252 = vmatprep.mubr.bf16.mxu0 0
      %253 = vmatmul.mubr.bf16.gmra.mxu0 %v149
      %v254 = vpop.f32.mrf.mxu0
      %v255 = vadd.f32 %v114, %v254
      %v256 = vpop.f32.mrf.mxu0
      %v257 = vpop.f32.mrf.mxu0
      %v258 = vadd.f32 %v114, %v257
      %v259 = vpop.f32.mrf.mxu0
      %260 = vmatprep.mubr.bf16.mxu0 0
      %261 = vmatmul.mubr.bf16.gmra.mxu0 %v150
      %v262 = vpop.f32.mrf.mxu0
      %v263 = vadd.f32 %v114, %v262
      %v264 = vpop.f32.mrf.mxu0
      %v265 = vpop.f32.mrf.mxu0
      %v266 = vadd.f32 %v114, %v265
      %v267 = vpop.f32.mrf.mxu0
      %268 = vmatprep.mubr.bf16.mxu0 0
      %269 = vmatmul.mubr.bf16.gmra.mxu0 %v151
      %v270 = vpop.f32.mrf.mxu0
      %v271 = vadd.f32 %v114, %v270
      %v272 = vpop.f32.mrf.mxu0
      %v273 = vpop.f32.mrf.mxu0
      %v274 = vadd.f32 %v114, %v273
      %v275 = vpop.f32.mrf.mxu0
      %276 = vmatprep.mubr.bf16.mxu0 0
      %277 = vmatmul.mubr.bf16.gmra.mxu0 %v152
      %v278 = vpop.f32.mrf.mxu0
      %v279 = vadd.f32 %v114, %v278
      %v280 = vpop.f32.mrf.mxu0
      %v281 = vpop.f32.mrf.mxu0
      %v282 = vadd.f32 %v114, %v281
      %v283 = vpop.f32.mrf.mxu0
      %284 = vmatprep.mubr.bf16.mxu0 0
      %285 = vmatmul.mubr.bf16.gmra.mxu0 %v153
      %v286 = vpop.f32.mrf.mxu0
      %v287 = vadd.f32 %v114, %v286
      %v288 = vpop.f32.mrf.mxu0
      %v289 = vpop.f32.mrf.mxu0
      %v290 = vadd.f32 %v114, %v289
      %v291 = vpop.f32.mrf.mxu0
      %292 = vmatprep.mubr.bf16.mxu0 0
      %293 = vmatmul.mubr.bf16.gmra.mxu0 %v154
      %v294 = vpop.f32.mrf.mxu0
      %v295 = vadd.f32 %v114, %v294
      %v296 = vpop.f32.mrf.mxu0
      %v297 = vpop.f32.mrf.mxu0
      %v298 = vadd.f32 %v114, %v297
      %v299 = vpop.f32.mrf.mxu0
      %300 = vmatprep.mubr.bf16.mxu0 0
      %301 = vmatmul.mubr.bf16.gmra.mxu0 %v155
      %v302 = vpop.f32.mrf.mxu0
      %v303 = vadd.f32 %v114, %v302
      %v304 = vpop.f32.mrf.mxu0
      %v305 = vpop.f32.mrf.mxu0
      %v306 = vadd.f32 %v114, %v305
      %v307 = vpop.f32.mrf.mxu0
      %308 = vdwg.mxu0
      %309 = vst [vmem:[#allocation2] sm:$0xff] %v247
      %310 = vst [vmem:[#allocation2 + $0x8] sm:$0xff] %v250
      %311 = vst [vmem:[#allocation2 + $0x10] sm:$0xff] %v255
      %312 = vst [vmem:[#allocation2 + $0x18] sm:$0xff] %v258
      %313 = vst [vmem:[#allocation2 + $0x20] sm:$0xff] %v263
      %314 = vst [vmem:[#allocation2 + $0x28] sm:$0xff] %v266
      %315 = vst [vmem:[#allocation2 + $0x30] sm:$0xff] %v271
      %316 = vst [vmem:[#allocation2 + $0x38] sm:$0xff] %v274
      %317 = vst [vmem:[#allocation2 + $0x40] sm:$0xff] %v279
      %318 = vst [vmem:[#allocation2 + $0x48] sm:$0xff] %v282
      %319 = vst [vmem:[#allocation2 + $0x50] sm:$0xff] %v287
      %320 = vst [vmem:[#allocation2 + $0x58] sm:$0xff] %v290
      %321 = vst [vmem:[#allocation2 + $0x60] sm:$0xff] %v295
      %322 = vst [vmem:[#allocation2 + $0x68] sm:$0xff] %v298
      %323 = vst [vmem:[#allocation2 + $0x70] sm:$0xff] %v303
      %324 = vst [vmem:[#allocation2 + $0x78] sm:$0xff] %v306
      %v325 = vpack.c.bf16 %v250, %v247
      %v326 = vpack.c.bf16 %v258, %v255
      %v327 = vpack.c.bf16 %v266, %v263
      %v328 = vpack.c.bf16 %v274, %v271
      %v329 = vpack.c.bf16 %v282, %v279
      %v330 = vpack.c.bf16 %v290, %v287
      %v331 = vpack.c.bf16 %v298, %v295
      %v332 = vpack.c.bf16 %v306, %v303
      %v341 = vunpack.c.l.b16 %v325
      %v342 = vunpack.c.h.b16 %v325
      %v343 = vunpack.c.l.b16 %v326
      %v344 = vunpack.c.h.b16 %v326
      %v345 = vunpack.c.l.b16 %v327
      %v346 = vunpack.c.h.b16 %v327
      %v347 = vunpack.c.l.b16 %v328
      %v348 = vunpack.c.h.b16 %v328
      %v349 = vunpack.c.l.b16 %v329
      %v350 = vunpack.c.h.b16 %v329
      %v351 = vunpack.c.l.b16 %v330
      %v352 = vunpack.c.h.b16 %v330
      %v353 = vunpack.c.l.b16 %v331
      %v354 = vunpack.c.h.b16 %v331
      %v355 = vunpack.c.l.b16 %v332
      %v356 = vunpack.c.h.b16 %v332
      %v357 = vpack.c.b16 %v341, %v341
      %v358 = vpack.c.b16 %v342, %v342
      %v359 = vpack.c.b16 %v343, %v343
      %v360 = vpack.c.b16 %v344, %v344
      %v361 = vpack.c.b16 %v345, %v345
      %v362 = vpack.c.b16 %v346, %v346
      %v363 = vpack.c.b16 %v347, %v347
      %v364 = vpack.c.b16 %v348, %v348
      %v365 = vpack.c.b16 %v349, %v349
      %v366 = vpack.c.b16 %v350, %v350
      %v367 = vpack.c.b16 %v351, %v351
      %v368 = vpack.c.b16 %v352, %v352
      %v369 = vpack.c.b16 %v353, %v353
      %v370 = vpack.c.b16 %v354, %v354
      %v371 = vpack.c.b16 %v355, %v355
      %v372 = vpack.c.b16 %v356, %v356
      %389 = vst [vmem:[#allocation3] sm:$0xf] %v357
      %390 = vst [vmem:[#allocation3 + $0x4] sm:$0xf] %v358
      %391 = vst [vmem:[#allocation3 + $0x8] sm:$0xf] %v359
      %392 = vst [vmem:[#allocation3 + $0xc] sm:$0xf] %v360
      %393 = vst [vmem:[#allocation3 + $0x10] sm:$0xf] %v361
      %394 = vst [vmem:[#allocation3 + $0x14] sm:$0xf] %v362
      %395 = vst [vmem:[#allocation3 + $0x18] sm:$0xf] %v363
      %396 = vst [vmem:[#allocation3 + $0x1c] sm:$0xf] %v364
      %397 = vst [vmem:[#allocation3 + $0x20] sm:$0xf] %v365
      %398 = vst [vmem:[#allocation3 + $0x24] sm:$0xf] %v366
      %399 = vst [vmem:[#allocation3 + $0x28] sm:$0xf] %v367
      %400 = vst [vmem:[#allocation3 + $0x2c] sm:$0xf] %v368
      %401 = vst [vmem:[#allocation3 + $0x30] sm:$0xf] %v369
      %402 = vst [vmem:[#allocation3 + $0x34] sm:$0xf] %v370
      %403 = vst [vmem:[#allocation3 + $0x38] sm:$0xf] %v371
      %404 = vst [vmem:[#allocation3 + $0x3c] sm:$0xf] %v372
      %v405 = vld [vmem:[%s3] sm:$0x1]
      %v406 = vld [vmem:[#allocation5] sm:$0x1]
      %408 = vset.pattern.permute.xlu0 0
      %409 = vperm.xlu0 %408, %v406
      %v410 = vpop.permute.xlu0 %409
      %v412 = vlaneseq
      %v413 = vshrl.u32 %v412, 7
      %v414 = vsub.s32 0, %v413
      %v415 = vrot.slane %v410, %v414
      %416 = vmatprep.subr.mxu0 0.0
      %417 = vmatpush1.xpose.msra.mxu0 %v306
      %418 = vmatprep.subr.mxu0 0.0
      %419 = vmatpush1.xpose.msra.mxu0 %v303
      %420 = vmatprep.subr.mxu0 0.0
      %421 = vmatpush1.xpose.msra.mxu0 %v298
      %422 = vmatprep.subr.mxu0 0.0
      %423 = vmatpush1.xpose.msra.mxu0 %v295
      %424 = vmatprep.subr.mxu0 0.0
      %425 = vmatpush1.xpose.msra.mxu0 %v290
      %426 = vmatprep.subr.mxu0 0.0
      %427 = vmatpush1.xpose.msra.mxu0 %v287
      %428 = vmatprep.subr.mxu0 0.0
      %429 = vmatpush1.xpose.msra.mxu0 %v282
      %430 = vmatprep.subr.mxu0 0.0
      %431 = vmatpush1.xpose.msra.mxu0 %v279
      %432 = vmatprep.subr.mxu0 0.0
      %433 = vmatpush1.xpose.msra.mxu0 %v274
      %434 = vmatprep.subr.mxu0 0.0
      %435 = vmatpush1.xpose.msra.mxu0 %v271
      %436 = vmatprep.subr.mxu0 0.0
      %437 = vmatpush1.xpose.msra.mxu0 %v266
      %438 = vmatprep.subr.mxu0 0.0
      %439 = vmatpush1.xpose.msra.mxu0 %v263
      %440 = vmatprep.subr.mxu0 0.0
      %441 = vmatpush1.xpose.msra.mxu0 %v258
      %442 = vmatprep.subr.mxu0 0.0
      %443 = vmatpush1.xpose.msra.mxu0 %v255
      %444 = vmatprep.subr.mxu0 0.0
      %445 = vmatpush1.xpose.msra.mxu0 %v250
      %446 = vmatprep.subr.mxu0 0.0
      %447 = vmatpush1.xpose.msra.mxu0 %v247
      %448 = vmatprep.subr.mxu0 0.0
      %449 = vmatpush2.xpose.msra.mxu0 0.0
      %450 = vmatprep.subr.mxu0 0.0
      %451 = vmatpush2.xpose.msra.mxu0 0.0
      %452 = vmatprep.subr.mxu0 0.0
      %453 = vmatpush2.xpose.msra.mxu0 0.0
      %454 = vmatprep.subr.mxu0 0.0
      %455 = vmatpush2.xpose.msra.mxu0 0.0
      %456 = vmatprep.subr.mxu0 0.0
      %457 = vmatpush2.xpose.msra.mxu0 0.0
      %458 = vmatprep.subr.mxu0 0.0
      %459 = vmatpush2.xpose.msra.mxu0 0.0
      %460 = vmatprep.subr.mxu0 0.0
      %461 = vmatpush2.xpose.msra.mxu0 0.0
      %462 = vmatprep.subr.mxu0 0.0
      %463 = vmatpush2.xpose.msra.mxu0 0.0
      %464 = vmatprep.subr.mxu0 0.0
      %465 = vmatpush2.xpose.msra.mxu0 0.0
      %466 = vmatprep.subr.mxu0 0.0
      %467 = vmatpush2.xpose.msra.mxu0 0.0
      %468 = vmatprep.subr.mxu0 0.0
      %469 = vmatpush2.xpose.msra.mxu0 0.0
      %470 = vmatprep.subr.mxu0 0.0
      %471 = vmatpush2.xpose.msra.mxu0 0.0
      %472 = vmatprep.subr.mxu0 0.0
      %473 = vmatpush2.xpose.msra.mxu0 0.0
      %474 = vmatprep.subr.mxu0 0.0
      %475 = vmatpush2.xpose.msra.mxu0 0.0
      %476 = vmatprep.subr.mxu0 0.0
      %477 = vmatpush2.xpose.msra.mxu0 0.0
      %478 = vmatprep.subr.mxu0 0.0
      %479 = vmatpush2.xpose.msra.mxu0 0.0
      %480 = vmatprep.mubr.f32.mxu0 0.0
      %481 = vmatmul.mubr.f32.gmra.mxu0 %v405
      %v482 = vpop.f32.mrf.mxu0
      %v483 = vadd.f32 %v415, %v482
      %v484 = vpop.f32.mrf.mxu0
      %485 = vdwg.mxu0
      %486 = vst [vmem:[#allocation4] sm:$0x1] %v483
    $region45: #{tpu_custom_call.1} parent=1 // pred_fallthru
      _
    %s487 = smul.u32 0, 128
    %s488 = scalar_lea.vmem [#allocation2], %s487
    %v489 = vld [vmem:[%s488] sm:$0xff]
    %v490 = vld [vmem:[%s488 + $0x8] sm:$0xff]
    %v491 = vld [vmem:[%s488 + $0x10] sm:$0xff]
    %v492 = vld [vmem:[%s488 + $0x18] sm:$0xff]
    %v493 = vld [vmem:[%s488 + $0x20] sm:$0xff]
    %v494 = vld [vmem:[%s488 + $0x28] sm:$0xff]
    %v495 = vld [vmem:[%s488 + $0x30] sm:$0xff]
    %v496 = vld [vmem:[%s488 + $0x38] sm:$0xff]
    %v497 = vld [vmem:[%s488 + $0x40] sm:$0xff]
    %v498 = vld [vmem:[%s488 + $0x48] sm:$0xff]
    %v499 = vld [vmem:[%s488 + $0x50] sm:$0xff]
    %v500 = vld [vmem:[%s488 + $0x58] sm:$0xff]
    %v501 = vld [vmem:[%s488 + $0x60] sm:$0xff]
    %v502 = vld [vmem:[%s488 + $0x68] sm:$0xff]
    %v503 = vld [vmem:[%s488 + $0x70] sm:$0xff]
    %v504 = vld [vmem:[%s488 + $0x78] sm:$0xff]
    %v505 = vld [vmem:[%s4] sm:$0x1]
    %v507 = vlaneseq
    %v508 = vshrl.u32 %v507, 7
    %v509 = vsub.s32 0, %v508
    %v510 = vrot.slane %v505, %v509
    %v512 = vmul.f32 %v489, %v510
    %v513 = vmul.f32 %v490, %v510
    %v514 = vmul.f32 %v491, %v510
    %v515 = vmul.f32 %v492, %v510
    %v516 = vmul.f32 %v493, %v510
    %v517 = vmul.f32 %v494, %v510
    %v518 = vmul.f32 %v495, %v510
    %v519 = vmul.f32 %v496, %v510
    %v520 = vmul.f32 %v497, %v510
    %v521 = vmul.f32 %v498, %v510
    %v522 = vmul.f32 %v499, %v510
    %v523 = vmul.f32 %v500, %v510
    %v524 = vmul.f32 %v501, %v510
    %v525 = vmul.f32 %v502, %v510
    %v526 = vmul.f32 %v503, %v510
    %v527 = vmul.f32 %v504, %v510
    %528 = vadd.xlane.f32.xlu0 %v512
    %v529 = vpop.xlane.xlu0 %528
    %530 = vadd.xlane.f32.xlu0 %v513
    %v531 = vpop.xlane.xlu0 %530
    %532 = vadd.xlane.f32.xlu0 %v514
    %v533 = vpop.xlane.xlu0 %532
    %534 = vadd.xlane.f32.xlu0 %v515
    %v535 = vpop.xlane.xlu0 %534
    %536 = vadd.xlane.f32.xlu0 %v516
    %v537 = vpop.xlane.xlu0 %536
    %538 = vadd.xlane.f32.xlu0 %v517
    %v539 = vpop.xlane.xlu0 %538
    %540 = vadd.xlane.f32.xlu0 %v518
    %v541 = vpop.xlane.xlu0 %540
    %542 = vadd.xlane.f32.xlu0 %v519
    %v543 = vpop.xlane.xlu0 %542
    %544 = vadd.xlane.f32.xlu0 %v520
    %v545 = vpop.xlane.xlu0 %544
    %546 = vadd.xlane.f32.xlu0 %v521
    %v547 = vpop.xlane.xlu0 %546
    %548 = vadd.xlane.f32.xlu0 %v522
    %v549 = vpop.xlane.xlu0 %548
    %550 = vadd.xlane.f32.xlu0 %v523
    %v551 = vpop.xlane.xlu0 %550
    %552 = vadd.xlane.f32.xlu0 %v524
    %v553 = vpop.xlane.xlu0 %552
    %554 = vadd.xlane.f32.xlu0 %v525
    %v555 = vpop.xlane.xlu0 %554
    %556 = vadd.xlane.f32.xlu0 %v526
    %v557 = vpop.xlane.xlu0 %556
    %558 = vadd.xlane.f32.xlu0 %v527
    %v559 = vpop.xlane.xlu0 %558
    %v560 = vld [vmem:[#allocation4] sm:$0x1]
    %v562 = vlaneseq
    %v563 = vshrl.u32 %v562, 7
    %v564 = vsub.s32 0, %v563
    %v565 = vrot.slane %v560, %v564
    %v567 = vadd.f32 %v529, %v565
    %v568 = vadd.f32 %v531, %v565
    %v569 = vadd.f32 %v533, %v565
    %v570 = vadd.f32 %v535, %v565
    %v571 = vadd.f32 %v537, %v565
    %v572 = vadd.f32 %v539, %v565
    %v573 = vadd.f32 %v541, %v565
    %v574 = vadd.f32 %v543, %v565
    %v575 = vadd.f32 %v545, %v565
    %v576 = vadd.f32 %v547, %v565
    %v577 = vadd.f32 %v549, %v565
    %v578 = vadd.f32 %v551, %v565
    %v579 = vadd.f32 %v553, %v565
    %v580 = vadd.f32 %v555, %v565
    %v581 = vadd.f32 %v557, %v565
    %v582 = vadd.f32 %v559, %v565
    %vm583 = vcmp.gt.f32.partialorder %v567, 0.0
    %vm584 = vcmp.gt.f32.partialorder %v568, 0.0
    %vm585 = vcmp.gt.f32.partialorder %v569, 0.0
    %vm586 = vcmp.gt.f32.partialorder %v570, 0.0
    %vm587 = vcmp.gt.f32.partialorder %v571, 0.0
    %vm588 = vcmp.gt.f32.partialorder %v572, 0.0
    %vm589 = vcmp.gt.f32.partialorder %v573, 0.0
    %vm590 = vcmp.gt.f32.partialorder %v574, 0.0
    %vm591 = vcmp.gt.f32.partialorder %v575, 0.0
    %vm592 = vcmp.gt.f32.partialorder %v576, 0.0
    %vm593 = vcmp.gt.f32.partialorder %v577, 0.0
    %vm594 = vcmp.gt.f32.partialorder %v578, 0.0
    %vm595 = vcmp.gt.f32.partialorder %v579, 0.0
    %vm596 = vcmp.gt.f32.partialorder %v580, 0.0
    %vm597 = vcmp.gt.f32.partialorder %v581, 0.0
    %vm598 = vcmp.gt.f32.partialorder %v582, 0.0
    %v599 = vmul.f32 %v567, 0.2
    %v600 = vmul.f32 %v568, 0.2
    %v601 = vmul.f32 %v569, 0.2
    %v602 = vmul.f32 %v570, 0.2
    %v603 = vmul.f32 %v571, 0.2
    %v604 = vmul.f32 %v572, 0.2
    %v605 = vmul.f32 %v573, 0.2
    %v606 = vmul.f32 %v574, 0.2
    %v607 = vmul.f32 %v575, 0.2
    %v608 = vmul.f32 %v576, 0.2
    %v609 = vmul.f32 %v577, 0.2
    %v610 = vmul.f32 %v578, 0.2
    %v611 = vmul.f32 %v579, 0.2
    %v612 = vmul.f32 %v580, 0.2
    %v613 = vmul.f32 %v581, 0.2
    %v614 = vmul.f32 %v582, 0.2
    %v615 = vsel %vm583, %v567, %v599
    %v616 = vsel %vm584, %v568, %v600
    %v617 = vsel %vm585, %v569, %v601
    %v618 = vsel %vm586, %v570, %v602
    %v619 = vsel %vm587, %v571, %v603
    %v620 = vsel %vm588, %v572, %v604
    %v621 = vsel %vm589, %v573, %v605
    %v622 = vsel %vm590, %v574, %v606
    %v623 = vsel %vm591, %v575, %v607
    %v624 = vsel %vm592, %v576, %v608
    %v625 = vsel %vm593, %v577, %v609
    %v626 = vsel %vm594, %v578, %v610
    %v627 = vsel %vm595, %v579, %v611
    %v628 = vsel %vm596, %v580, %v612
    %v629 = vsel %vm597, %v581, %v613
    %v630 = vsel %vm598, %v582, %v614
    %v631 = vld [vmem:[#allocation11] sm:$0xf]
    %v632 = vld [vmem:[#allocation11 + $0x4] sm:$0xf]
    %v633 = vld [vmem:[#allocation11 + $0x8] sm:$0xf]
    %v634 = vld [vmem:[#allocation11 + $0xc] sm:$0xf]
    %v635 = vld [vmem:[#allocation11 + $0x10] sm:$0xf]
    %v636 = vld [vmem:[#allocation11 + $0x14] sm:$0xf]
    %v637 = vld [vmem:[#allocation11 + $0x18] sm:$0xf]
    %v638 = vld [vmem:[#allocation11 + $0x1c] sm:$0xf]
    %v639 = vld [vmem:[#allocation11 + $0x20] sm:$0xf]
    %v640 = vld [vmem:[#allocation11 + $0x24] sm:$0xf]
    %v641 = vld [vmem:[#allocation11 + $0x28] sm:$0xf]
    %v642 = vld [vmem:[#allocation11 + $0x2c] sm:$0xf]
    %v643 = vld [vmem:[#allocation11 + $0x30] sm:$0xf]
    %v644 = vld [vmem:[#allocation11 + $0x34] sm:$0xf]
    %v645 = vld [vmem:[#allocation11 + $0x38] sm:$0xf]
    %v646 = vld [vmem:[#allocation11 + $0x3c] sm:$0xf]
    %vm647 = vcmp.gt.bf16.partialorder %v631, 0
    %vm648 = vcmp.gt.bf16.partialorder %v632, 0
    %vm649 = vcmp.gt.bf16.partialorder %v633, 0
    %vm650 = vcmp.gt.bf16.partialorder %v634, 0
    %vm651 = vcmp.gt.bf16.partialorder %v635, 0
    %vm652 = vcmp.gt.bf16.partialorder %v636, 0
    %vm653 = vcmp.gt.bf16.partialorder %v637, 0
    %vm654 = vcmp.gt.bf16.partialorder %v638, 0
    %vm655 = vcmp.gt.bf16.partialorder %v639, 0
    %vm656 = vcmp.gt.bf16.partialorder %v640, 0
    %vm657 = vcmp.gt.bf16.partialorder %v641, 0
    %vm658 = vcmp.gt.bf16.partialorder %v642, 0
    %vm659 = vcmp.gt.bf16.partialorder %v643, 0
    %vm660 = vcmp.gt.bf16.partialorder %v644, 0
    %vm661 = vcmp.gt.bf16.partialorder %v645, 0
    %vm662 = vcmp.gt.bf16.partialorder %v646, 0
    %v663 = vsel %vm647, 65537, 0
    %v664 = vsel %vm648, 65537, 0
    %v665 = vsel %vm649, 65537, 0
    %v666 = vsel %vm650, 65537, 0
    %v667 = vsel %vm651, 65537, 0
    %v668 = vsel %vm652, 65537, 0
    %v669 = vsel %vm653, 65537, 0
    %v670 = vsel %vm654, 65537, 0
    %v671 = vsel %vm655, 65537, 0
    %v672 = vsel %vm656, 65537, 0
    %v673 = vsel %vm657, 65537, 0
    %v674 = vsel %vm658, 65537, 0
    %v675 = vsel %vm659, 65537, 0
    %v676 = vsel %vm660, 65537, 0
    %v677 = vsel %vm661, 65537, 0
    %v678 = vsel %vm662, 65537, 0
    %v679 = vunpack.c.l.b16 %v663
    %v680 = vunpack.c.l.b16 %v664
    %v681 = vunpack.c.l.b16 %v665
    %v682 = vunpack.c.l.b16 %v666
    %v683 = vunpack.c.l.b16 %v667
    %v684 = vunpack.c.l.b16 %v668
    %v685 = vunpack.c.l.b16 %v669
    %v686 = vunpack.c.l.b16 %v670
    %v687 = vunpack.c.l.b16 %v671
    %v688 = vunpack.c.l.b16 %v672
    %v689 = vunpack.c.l.b16 %v673
    %v690 = vunpack.c.l.b16 %v674
    %v691 = vunpack.c.l.b16 %v675
    %v692 = vunpack.c.l.b16 %v676
    %v693 = vunpack.c.l.b16 %v677
    %v694 = vunpack.c.l.b16 %v678
    %vm695 = vcmp.ne.s32.totalorder %v679, 0
    %vm696 = vcmp.ne.s32.totalorder %v680, 0
    %vm697 = vcmp.ne.s32.totalorder %v681, 0
    %vm698 = vcmp.ne.s32.totalorder %v682, 0
    %vm699 = vcmp.ne.s32.totalorder %v683, 0
    %vm700 = vcmp.ne.s32.totalorder %v684, 0
    %vm701 = vcmp.ne.s32.totalorder %v685, 0
    %vm702 = vcmp.ne.s32.totalorder %v686, 0
    %vm703 = vcmp.ne.s32.totalorder %v687, 0
    %vm704 = vcmp.ne.s32.totalorder %v688, 0
    %vm705 = vcmp.ne.s32.totalorder %v689, 0
    %vm706 = vcmp.ne.s32.totalorder %v690, 0
    %vm707 = vcmp.ne.s32.totalorder %v691, 0
    %vm708 = vcmp.ne.s32.totalorder %v692, 0
    %vm709 = vcmp.ne.s32.totalorder %v693, 0
    %vm710 = vcmp.ne.s32.totalorder %v694, 0
    %v711 = vsel %vm695, %v615, -1e+30
    %v712 = vsel %vm696, %v616, -1e+30
    %v713 = vsel %vm697, %v617, -1e+30
    %v714 = vsel %vm698, %v618, -1e+30
    %v715 = vsel %vm699, %v619, -1e+30
    %v716 = vsel %vm700, %v620, -1e+30
    %v717 = vsel %vm701, %v621, -1e+30
    %v718 = vsel %vm702, %v622, -1e+30
    %v719 = vsel %vm703, %v623, -1e+30
    %v720 = vsel %vm704, %v624, -1e+30
    %v721 = vsel %vm705, %v625, -1e+30
    %v722 = vsel %vm706, %v626, -1e+30
    %v723 = vsel %vm707, %v627, -1e+30
    %v724 = vsel %vm708, %v628, -1e+30
    %v725 = vsel %vm709, %v629, -1e+30
    %v726 = vsel %vm710, %v630, -1e+30
    %727 = vmax.xlane.f32.xlu0 %v711
    %v728 = vpop.xlane.xlu0 %727
    %729 = vmax.xlane.f32.xlu0 %v712
    %v730 = vpop.xlane.xlu0 %729
    %731 = vmax.xlane.f32.xlu0 %v713
    %v732 = vpop.xlane.xlu0 %731
    %733 = vmax.xlane.f32.xlu0 %v714
    %v734 = vpop.xlane.xlu0 %733
    %735 = vmax.xlane.f32.xlu0 %v715
    %v736 = vpop.xlane.xlu0 %735
    %737 = vmax.xlane.f32.xlu0 %v716
    %v738 = vpop.xlane.xlu0 %737
    %739 = vmax.xlane.f32.xlu0 %v717
    %v740 = vpop.xlane.xlu0 %739
    %741 = vmax.xlane.f32.xlu0 %v718
    %v742 = vpop.xlane.xlu0 %741
    %743 = vmax.xlane.f32.xlu0 %v719
    %v744 = vpop.xlane.xlu0 %743
    %745 = vmax.xlane.f32.xlu0 %v720
    %v746 = vpop.xlane.xlu0 %745
    %747 = vmax.xlane.f32.xlu0 %v721
    %v748 = vpop.xlane.xlu0 %747
    %749 = vmax.xlane.f32.xlu0 %v722
    %v750 = vpop.xlane.xlu0 %749
    %751 = vmax.xlane.f32.xlu0 %v723
    %v752 = vpop.xlane.xlu0 %751
    %753 = vmax.xlane.f32.xlu0 %v724
    %v754 = vpop.xlane.xlu0 %753
    %755 = vmax.xlane.f32.xlu0 %v725
    %v756 = vpop.xlane.xlu0 %755
    %757 = vmax.xlane.f32.xlu0 %v726
    %v758 = vpop.xlane.xlu0 %757
    %v759 = vsub.f32 %v711, %v728
    %v760 = vsub.f32 %v712, %v730
    %v761 = vsub.f32 %v713, %v732
    %v762 = vsub.f32 %v714, %v734
    %v763 = vsub.f32 %v715, %v736
    %v764 = vsub.f32 %v716, %v738
    %v765 = vsub.f32 %v717, %v740
    %v766 = vsub.f32 %v718, %v742
    %v767 = vsub.f32 %v719, %v744
    %v768 = vsub.f32 %v720, %v746
    %v769 = vsub.f32 %v721, %v748
    %v770 = vsub.f32 %v722, %v750
    %v771 = vsub.f32 %v723, %v752
    %v772 = vsub.f32 %v724, %v754
    %v773 = vsub.f32 %v725, %v756
    %v774 = vsub.f32 %v726, %v758
    %v775 = vmul.f32 %v759, 1.442695
    %v776 = vpow.pop %v775
    %v777 = vmul.f32 %v760, 1.442695
    %v778 = vpow.pop %v777
    %v779 = vmul.f32 %v761, 1.442695
    %v780 = vpow.pop %v779
    %v781 = vmul.f32 %v762, 1.442695
    %v782 = vpow.pop %v781
    %v783 = vmul.f32 %v763, 1.442695
    %v784 = vpow.pop %v783
    %v785 = vmul.f32 %v764, 1.442695
    %v786 = vpow.pop %v785
    %v787 = vmul.f32 %v765, 1.442695
    %v788 = vpow.pop %v787
    %v789 = vmul.f32 %v766, 1.442695
    %v790 = vpow.pop %v789
    %v791 = vmul.f32 %v767, 1.442695
    %v792 = vpow.pop %v791
    %v793 = vmul.f32 %v768, 1.442695
    %v794 = vpow.pop %v793
    %v795 = vmul.f32 %v769, 1.442695
    %v796 = vpow.pop %v795
    %v797 = vmul.f32 %v770, 1.442695
    %v798 = vpow.pop %v797
    %v799 = vmul.f32 %v771, 1.442695
    %v800 = vpow.pop %v799
    %v801 = vmul.f32 %v772, 1.442695
    %v802 = vpow.pop %v801
    %v803 = vmul.f32 %v773, 1.442695
    %v804 = vpow.pop %v803
    %v805 = vmul.f32 %v774, 1.442695
    %v806 = vpow.pop %v805
    %807 = vadd.xlane.f32.xlu0 %v776
    %v808 = vpop.xlane.xlu0 %807
    %809 = vadd.xlane.f32.xlu0 %v778
    %v810 = vpop.xlane.xlu0 %809
    %811 = vadd.xlane.f32.xlu0 %v780
    %v812 = vpop.xlane.xlu0 %811
    %813 = vadd.xlane.f32.xlu0 %v782
    %v814 = vpop.xlane.xlu0 %813
    %815 = vadd.xlane.f32.xlu0 %v784
    %v816 = vpop.xlane.xlu0 %815
    %817 = vadd.xlane.f32.xlu0 %v786
    %v818 = vpop.xlane.xlu0 %817
    %819 = vadd.xlane.f32.xlu0 %v788
    %v820 = vpop.xlane.xlu0 %819
    %821 = vadd.xlane.f32.xlu0 %v790
    %v822 = vpop.xlane.xlu0 %821
    %823 = vadd.xlane.f32.xlu0 %v792
    %v824 = vpop.xlane.xlu0 %823
    %825 = vadd.xlane.f32.xlu0 %v794
    %v826 = vpop.xlane.xlu0 %825
    %827 = vadd.xlane.f32.xlu0 %v796
    %v828 = vpop.xlane.xlu0 %827
    %829 = vadd.xlane.f32.xlu0 %v798
    %v830 = vpop.xlane.xlu0 %829
    %831 = vadd.xlane.f32.xlu0 %v800
    %v832 = vpop.xlane.xlu0 %831
    %833 = vadd.xlane.f32.xlu0 %v802
    %v834 = vpop.xlane.xlu0 %833
    %835 = vadd.xlane.f32.xlu0 %v804
    %v836 = vpop.xlane.xlu0 %835
    %837 = vadd.xlane.f32.xlu0 %v806
    %v838 = vpop.xlane.xlu0 %837
    %v839 = vrcp.pop %v808
    %v840 = vrcp.pop %v810
    %v841 = vrcp.pop %v812
    %v842 = vrcp.pop %v814
    %v843 = vrcp.pop %v816
    %v844 = vrcp.pop %v818
    %v845 = vrcp.pop %v820
    %v846 = vrcp.pop %v822
    %v847 = vrcp.pop %v824
    %v848 = vrcp.pop %v826
    %v849 = vrcp.pop %v828
    %v850 = vrcp.pop %v830
    %v851 = vrcp.pop %v832
    %v852 = vrcp.pop %v834
    %v853 = vrcp.pop %v836
    %v854 = vrcp.pop %v838
    %v855 = vmul.f32 %v776, %v839
    %v856 = vmul.f32 %v778, %v840
    %v857 = vmul.f32 %v780, %v841
    %v858 = vmul.f32 %v782, %v842
    %v859 = vmul.f32 %v784, %v843
    %v860 = vmul.f32 %v786, %v844
    %v861 = vmul.f32 %v788, %v845
    %v862 = vmul.f32 %v790, %v846
    %v863 = vmul.f32 %v792, %v847
    %v864 = vmul.f32 %v794, %v848
    %v865 = vmul.f32 %v796, %v849
    %v866 = vmul.f32 %v798, %v850
    %v867 = vmul.f32 %v800, %v851
    %v868 = vmul.f32 %v802, %v852
    %v869 = vmul.f32 %v804, %v853
    %v870 = vmul.f32 %v806, %v854
    %v871 = vpack.c.bf16 %v856, %v855
    %v872 = vpack.c.bf16 %v858, %v857
    %v873 = vpack.c.bf16 %v860, %v859
    %v874 = vpack.c.bf16 %v862, %v861
    %v875 = vpack.c.bf16 %v864, %v863
    %v876 = vpack.c.bf16 %v866, %v865
    %v877 = vpack.c.bf16 %v868, %v867
    %v878 = vpack.c.bf16 %v870, %v869
    %v879 = vld [vmem:[#allocation3] sm:$0xf]
    %v880 = vld [vmem:[#allocation3 + $0x4] sm:$0xf]
    %v881 = vld [vmem:[#allocation3 + $0x8] sm:$0xf]
    %v882 = vld [vmem:[#allocation3 + $0xc] sm:$0xf]
    %v883 = vld [vmem:[#allocation3 + $0x10] sm:$0xf]
    %v884 = vld [vmem:[#allocation3 + $0x14] sm:$0xf]
    %v885 = vld [vmem:[#allocation3 + $0x18] sm:$0xf]
    %v886 = vld [vmem:[#allocation3 + $0x1c] sm:$0xf]
    %v887 = vld [vmem:[#allocation3 + $0x20] sm:$0xf]
    %v888 = vld [vmem:[#allocation3 + $0x24] sm:$0xf]
    %v889 = vld [vmem:[#allocation3 + $0x28] sm:$0xf]
    %v890 = vld [vmem:[#allocation3 + $0x2c] sm:$0xf]
    %v891 = vld [vmem:[#allocation3 + $0x30] sm:$0xf]
    %v892 = vld [vmem:[#allocation3 + $0x34] sm:$0xf]
    %v893 = vld [vmem:[#allocation3 + $0x38] sm:$0xf]
    %v894 = vld [vmem:[#allocation3 + $0x3c] sm:$0xf]
    %v911 = vunpack.c.l.b16 %v879
    %v912 = vunpack.c.l.b16 %v880
    %v913 = vunpack.c.l.b16 %v881
    %v914 = vunpack.c.l.b16 %v882
    %v915 = vunpack.c.l.b16 %v883
    %v916 = vunpack.c.l.b16 %v884
    %v917 = vunpack.c.l.b16 %v885
    %v918 = vunpack.c.l.b16 %v886
    %v919 = vunpack.c.l.b16 %v887
    %v920 = vunpack.c.l.b16 %v888
    %v921 = vunpack.c.l.b16 %v889
    %v922 = vunpack.c.l.b16 %v890
    %v923 = vunpack.c.l.b16 %v891
    %v924 = vunpack.c.l.b16 %v892
    %v925 = vunpack.c.l.b16 %v893
    %v926 = vunpack.c.l.b16 %v894
    %v927 = vpack.c.b16 %v912, %v911
    %v928 = vpack.c.b16 %v914, %v913
    %v929 = vpack.c.b16 %v916, %v915
    %v930 = vpack.c.b16 %v918, %v917
    %v931 = vpack.c.b16 %v920, %v919
    %v932 = vpack.c.b16 %v922, %v921
    %v933 = vpack.c.b16 %v924, %v923
    %v934 = vpack.c.b16 %v926, %v925
    %943 = vmatprep.subr.bf16.mxu0 0
    %944 = vmatpush1.bf16.msra.mxu0 %v934
    %945 = vmatprep.subr.bf16.mxu0 0
    %946 = vmatpush1.bf16.msra.mxu0 %v933
    %947 = vmatprep.subr.bf16.mxu0 0
    %948 = vmatpush1.bf16.msra.mxu0 %v932
    %949 = vmatprep.subr.bf16.mxu0 0
    %950 = vmatpush1.bf16.msra.mxu0 %v931
    %951 = vmatprep.subr.bf16.mxu0 0
    %952 = vmatpush1.bf16.msra.mxu0 %v930
    %953 = vmatprep.subr.bf16.mxu0 0
    %954 = vmatpush1.bf16.msra.mxu0 %v929
    %955 = vmatprep.subr.bf16.mxu0 0
    %956 = vmatpush1.bf16.msra.mxu0 %v928
    %957 = vmatprep.subr.bf16.mxu0 0
    %958 = vmatpush1.bf16.msra.mxu0 %v927
    %959 = vmatprep.subr.bf16.mxu0 0
    %960 = vmatpush2.bf16.msra.mxu0 0
    %961 = vmatprep.subr.bf16.mxu0 0
    %962 = vmatpush2.bf16.msra.mxu0 0
    %963 = vmatprep.subr.bf16.mxu0 0
    %964 = vmatpush2.bf16.msra.mxu0 0
    %965 = vmatprep.subr.bf16.mxu0 0
    %966 = vmatpush2.bf16.msra.mxu0 0
    %967 = vmatprep.subr.bf16.mxu0 0
    %968 = vmatpush2.bf16.msra.mxu0 0
    %969 = vmatprep.subr.bf16.mxu0 0
    %970 = vmatpush2.bf16.msra.mxu0 0
    %971 = vmatprep.subr.bf16.mxu0 0
    %972 = vmatpush2.bf16.msra.mxu0 0
    %973 = vmatprep.subr.bf16.mxu0 0
    %974 = vmatpush2.bf16.msra.mxu0 0
    %975 = vmatprep.mubr.bf16.mxu0 0
    %976 = vmatmul.mubr.bf16.gmra.mxu0 %v871
    %v977 = vpop.f32.mrf.mxu0
    %v978 = vadd.f32 0.0, %v977
    %v979 = vpop.f32.mrf.mxu0
    %v980 = vpop.f32.mrf.mxu0
    %v981 = vadd.f32 0.0, %v980
    %v982 = vpop.f32.mrf.mxu0
    %983 = vmatprep.mubr.bf16.mxu0 0
    %984 = vmatmul.mubr.bf16.gmra.mxu0 %v872
    %v985 = vpop.f32.mrf.mxu0
    %v986 = vadd.f32 0.0, %v985
    %v987 = vpop.f32.mrf.mxu0
    %v988 = vpop.f32.mrf.mxu0
    %v989 = vadd.f32 0.0, %v988
    %v990 = vpop.f32.mrf.mxu0
    %991 = vmatprep.mubr.bf16.mxu0 0
    %992 = vmatmul.mubr.bf16.gmra.mxu0 %v873
    %v993 = vpop.f32.mrf.mxu0
    %v994 = vadd.f32 0.0, %v993
    %v995 = vpop.f32.mrf.mxu0
    %v996 = vpop.f32.mrf.mxu0
    %v997 = vadd.f32 0.0, %v996
    %v998 = vpop.f32.mrf.mxu0
    %999 = vmatprep.mubr.bf16.mxu0 0
    %1000 = vmatmul.mubr.bf16.gmra.mxu0 %v874
    %v1001 = vpop.f32.mrf.mxu0
    %v1002 = vadd.f32 0.0, %v1001
    %v1003 = vpop.f32.mrf.mxu0
    %v1004 = vpop.f32.mrf.mxu0
    %v1005 = vadd.f32 0.0, %v1004
    %v1006 = vpop.f32.mrf.mxu0
    %1007 = vmatprep.mubr.bf16.mxu0 0
    %1008 = vmatmul.mubr.bf16.gmra.mxu0 %v875
    %v1009 = vpop.f32.mrf.mxu0
    %v1010 = vadd.f32 0.0, %v1009
    %v1011 = vpop.f32.mrf.mxu0
    %v1012 = vpop.f32.mrf.mxu0
    %v1013 = vadd.f32 0.0, %v1012
    %v1014 = vpop.f32.mrf.mxu0
    %1015 = vmatprep.mubr.bf16.mxu0 0
    %1016 = vmatmul.mubr.bf16.gmra.mxu0 %v876
    %v1017 = vpop.f32.mrf.mxu0
    %v1018 = vadd.f32 0.0, %v1017
    %v1019 = vpop.f32.mrf.mxu0
    %v1020 = vpop.f32.mrf.mxu0
    %v1021 = vadd.f32 0.0, %v1020
    %v1022 = vpop.f32.mrf.mxu0
    %1023 = vmatprep.mubr.bf16.mxu0 0
    %1024 = vmatmul.mubr.bf16.gmra.mxu0 %v877
    %v1025 = vpop.f32.mrf.mxu0
    %v1026 = vadd.f32 0.0, %v1025
    %v1027 = vpop.f32.mrf.mxu0
    %v1028 = vpop.f32.mrf.mxu0
    %v1029 = vadd.f32 0.0, %v1028
    %v1030 = vpop.f32.mrf.mxu0
    %1031 = vmatprep.mubr.bf16.mxu0 0
    %1032 = vmatmul.mubr.bf16.gmra.mxu0 %v878
    %v1033 = vpop.f32.mrf.mxu0
    %v1034 = vadd.f32 0.0, %v1033
    %v1035 = vpop.f32.mrf.mxu0
    %v1036 = vpop.f32.mrf.mxu0
    %v1037 = vadd.f32 0.0, %v1036
    %v1038 = vpop.f32.mrf.mxu0
    %1039 = vdwg.mxu0
    %1040 = vst [vmem:[#allocation12] sm:$0xff] %v978
    %1041 = vst [vmem:[#allocation12 + $0x8] sm:$0xff] %v981
    %1042 = vst [vmem:[#allocation12 + $0x10] sm:$0xff] %v986
    %1043 = vst [vmem:[#allocation12 + $0x18] sm:$0xff] %v989
    %1044 = vst [vmem:[#allocation12 + $0x20] sm:$0xff] %v994
    %1045 = vst [vmem:[#allocation12 + $0x28] sm:$0xff] %v997
    %1046 = vst [vmem:[#allocation12 + $0x30] sm:$0xff] %v1002
    %1047 = vst [vmem:[#allocation12 + $0x38] sm:$0xff] %v1005
    %1048 = vst [vmem:[#allocation12 + $0x40] sm:$0xff] %v1010
    %1049 = vst [vmem:[#allocation12 + $0x48] sm:$0xff] %v1013
    %1050 = vst [vmem:[#allocation12 + $0x50] sm:$0xff] %v1018
    %1051 = vst [vmem:[#allocation12 + $0x58] sm:$0xff] %v1021
    %1052 = vst [vmem:[#allocation12 + $0x60] sm:$0xff] %v1026
    %1053 = vst [vmem:[#allocation12 + $0x68] sm:$0xff] %v1029
    %1054 = vst [vmem:[#allocation12 + $0x70] sm:$0xff] %v1034
    %1055 = vst [vmem:[#allocation12 + $0x78] sm:$0xff] %v1037
    // Predicated region
    $region46: #{tpu_custom_call.1} parent=1 // pred_check
      _
    $region47: #{tpu_custom_call.1} parent=1 // pred_check_branch
      %1057 = sbr.rel (0) target = $region49
    $region48: #{tpu_custom_call.1} parent=1 // pred_region
      %s1059 = ssub.s32 2048, 2048
      %1060 = vsyncadd [#allocation8], %s1059
      %s1061 = sshll.u32 [#allocation12], 4
      %s1062 = int_to_ptr.vmem [resolvable:$true] %s1061
      %1067 = dma.vmem_to_hbm [thread:$0]  %s1062, 2048, %s7, [#allocation8], 128, 128, 8
    $region49: #{tpu_custom_call.1} parent=1 // pred_fallthru
      _
    // Predicated region
    $region50: #{tpu_custom_call.1} parent=1 // pred_check
      _
    $region51: #{tpu_custom_call.1} parent=1 // pred_check_branch
      %1069 = sbr.rel (0) target = $region53
    $region52: #{tpu_custom_call.1} parent=1 // pred_region
      %1070 = dma.done [#allocation8], 2048
    $region53: #{tpu_custom_call.1} parent=1 // pred_fallthru
      _
    %1071 = vsyncpa [#allocation7], 1
    %1072 = vsyncpa [#allocation10], 1
    %1073 = vsyncpa [#allocation8], 1

</llo_original>
